<compile_context>
chip_gen: v7x
topology: tpu7x:2x2x1
jax: 0.10.0
libtpu: 0.0.40
codegen_flags: <defaults>
</compile_context>

<pallas_src>
import numpy as np
import jax
import jax.numpy as jnp
from jax.experimental import pallas as pl
from jax.experimental.pallas import tpu as pltpu


# ----------------------------------------------------------------------------
# Index construction (mirrors PermuteIn.__init__, deterministic)
# ----------------------------------------------------------------------------
def make_permute_indices(full_dim, heads, mode="structured", roll=0.4, chunks=4, seed=0):
    block_dim = full_dim // heads
    roll_n = int(roll * full_dim)
    rng = np.random.RandomState(seed)
    if mode == "random":
        permute = rng.permutation(full_dim)
    elif mode == "roll":
        permute = np.roll(np.arange(full_dim), roll_n)
    elif mode == "chunk_random":
        assert block_dim % chunks == 0, "chunks must divide the dim evenly"
        chunk = block_dim // chunks
        chunk_indices = rng.permutation(full_dim // chunk)
        permute = np.concatenate([np.arange(chunk) + i * chunk for i in chunk_indices])
    elif mode == "structured":
        indices = np.arange(full_dim)
        permute = (indices % heads) * block_dim + indices // heads
    else:
        raise NotImplementedError("mode not implemented")
    return permute.astype(np.int32)


# ----------------------------------------------------------------------------
# Tiling helpers (host-side, static)
# ----------------------------------------------------------------------------
def _pick_row_tile(batch, row_bytes, budget_bytes=2 * 1024 * 1024):
    """Largest multiple-of-8 divisor of batch whose block fits the budget.
    Falls back to the full batch (always layout-legal) when none qualifies."""
    cands = [c for c in (1024, 512, 256, 128, 64, 32, 16, 8)
             if batch % c == 0 and c * row_bytes <= budget_bytes]
    if cands:
        return max(cands)
    return batch


def _pick_lane_tile(dim):
    for c in (512, 256, 128):
        if dim % c == 0:
            return c
    return dim  # callers guarantee dim % 128 == 0


def _block_gather_table(perm, lane_block):
    """If every lane_block-wide output block maps to one aligned contiguous
    input block, return the per-output-block source-block table, else None."""
    d = perm.size
    if d % lane_block != 0:
        return None
    n_blocks = d // lane_block
    base = np.arange(lane_block)
    src = np.empty((n_blocks,), np.int32)
    for j in range(n_blocks):
        seg = perm[j * lane_block:(j + 1) * lane_block]
        s0 = int(seg[0])
        if s0 % lane_block != 0 or not np.array_equal(seg, base + s0):
            return None
        src[j] = s0 // lane_block
    return src


def _build_k_table(perm, tn, tk):
    """Per output tn-block, the list of input tk-blocks that hold nonzeros of P.
    Padded entries repeat the last VALID block (so consecutive grid steps keep
    the same block index -> Pallas skips the re-DMA); a parallel validity table
    marks pads so the kernel skips their MXU work with pl.when."""
    d = perm.size
    nj = d // tn
    lists = [np.unique(perm[j * tn:(j + 1) * tn] // tk) for j in range(nj)]
    kmax = max(len(l) for l in lists)
    ktab = np.zeros((nj, kmax), np.int32)
    vtab = np.zeros((nj, kmax), np.int32)
    for j, ks in enumerate(lists):
        ktab[j, :len(ks)] = ks
        vtab[j, :len(ks)] = 1
        if len(ks) < kmax:
            ktab[j, len(ks):] = ks[-1]  # same block index -> DMA skipped
    return ktab.reshape(-1), vtab.reshape(-1), kmax, int(vtab.sum())


# ----------------------------------------------------------------------------
# Path A: pure DMA block-gather (block-aligned permutations)
# ----------------------------------------------------------------------------
def _block_gather_call(x, src_table, lane_block):
    B, D = x.shape
    itemsize = x.dtype.itemsize
    tm = _pick_row_tile(B, 2 * lane_block * itemsize)
    n_blocks = D // lane_block

    def kernel(src_ref, x_ref, o_ref):
        # The permute is done by the DMA engine via the input index_map.
        o_ref[...] = x_ref[...]

    return pl.pallas_call(
        kernel,
        out_shape=jax.ShapeDtypeStruct((B, D), x.dtype),
        grid_spec=pltpu.PrefetchScalarGridSpec(
            num_scalar_prefetch=1,
            grid=(B // tm, n_blocks),
            in_specs=[pl.BlockSpec((tm, lane_block), lambda i, j, src: (i, src[j]))],
            out_specs=pl.BlockSpec((tm, lane_block), lambda i, j, src: (i, j)),
        ),
        compiler_params=pltpu.CompilerParams(
            dimension_semantics=("parallel", "parallel")),
        cost_estimate=pl.CostEstimate(
            flops=0, transcendentals=0,
            bytes_accessed=int(2 * B * D * itemsize)),
    )(src_table, x)


# ----------------------------------------------------------------------------
# Path B: cyclic shift via the XLU (unaligned 'roll' mode)
# ----------------------------------------------------------------------------
def _roll_call(x, shift):
    B, D = x.shape
    itemsize = x.dtype.itemsize
    tm = _pick_row_tile(B, 2 * D * itemsize)

    def kernel(x_ref, o_ref):
        o_ref[...] = pltpu.roll(x_ref[...], shift=shift, axis=1)

    return pl.pallas_call(
        kernel,
        out_shape=jax.ShapeDtypeStruct((B, D), x.dtype),
        grid_spec=pltpu.PrefetchScalarGridSpec(
            num_scalar_prefetch=0,
            grid=(B // tm,),
            in_specs=[pl.BlockSpec((tm, D), lambda i: (i, 0))],
            out_specs=pl.BlockSpec((tm, D), lambda i: (i, 0)),
        ),
        compiler_params=pltpu.CompilerParams(dimension_semantics=("parallel",)),
        cost_estimate=pl.CostEstimate(
            flops=0, transcendentals=0,
            bytes_accessed=int(2 * B * D * itemsize)),
    )(x)


# ----------------------------------------------------------------------------
# Path C: tiled one-hot matmul on the MXU with block-sparse K skipping
# (arbitrary permutations: 'structured', 'random')
# ----------------------------------------------------------------------------
def _matmul_call(x, P, ktable, vtable, kmax, n_valid, tn, tk):
    B, D = x.shape
    itemsize = x.dtype.itemsize
    row_bytes = (tk + tn) * itemsize + tn * 4  # x + out + f32 accumulator
    tm = _pick_row_tile(B, row_bytes)
    nj = D // tn

    def kernel(kt_ref, vt_ref, x_ref, p_ref, o_ref, acc_ref):
        j = pl.program_id(1)
        k = pl.program_id(2)

        @pl.when(k == 0)
        def _():
            acc_ref[...] = jnp.zeros_like(acc_ref)

        # Padded steps (duplicate block index) skip both the DMA (same block)
        # and the MXU work (validity gate).
        @pl.when(vt_ref[j * kmax + k] == 1)
        def _():
            acc_ref[...] += jnp.dot(x_ref[...], p_ref[...],
                                    preferred_element_type=jnp.float32)

        @pl.when(k == pl.num_programs(2) - 1)
        def _():
            o_ref[...] = acc_ref[...].astype(o_ref.dtype)

    valid_steps = (B // tm) * n_valid
    cost = pl.CostEstimate(
        flops=int(2 * tm * tn * tk * valid_steps),
        transcendentals=0,
        bytes_accessed=int(valid_steps * (tm * tk + tk * tn) * itemsize
                           + B * D * itemsize),
    )

    return pl.pallas_call(
        kernel,
        out_shape=jax.ShapeDtypeStruct((B, D), x.dtype),
        grid_spec=pltpu.PrefetchScalarGridSpec(
            num_scalar_prefetch=2,
            grid=(B // tm, nj, kmax),
            in_specs=[
                pl.BlockSpec((tm, tk), lambda i, j, k, kt, vt: (i, kt[j * kmax + k])),
                pl.BlockSpec((tk, tn), lambda i, j, k, kt, vt: (kt[j * kmax + k], j)),
            ],
            out_specs=pl.BlockSpec((tm, tn), lambda i, j, k, kt, vt: (i, j)),
            scratch_shapes=[pltpu.VMEM((tm, tn), jnp.float32)],
        ),
        compiler_params=pltpu.CompilerParams(
            dimension_semantics=("parallel", "parallel", "arbitrary"),
            vmem_limit_bytes=32 * 1024 * 1024,
        ),
        cost_estimate=cost,
    )(ktable, vtable, x, P)


# ----------------------------------------------------------------------------
# Module-equivalent wrapper: analyze the permutation once at init.
# ----------------------------------------------------------------------------
class PermuteInPallas:
    def __init__(self, full_dim, heads, mode="structured", roll=0.4, chunks=4,
                 seed=0, min_pallas_elems=2048):
        self.full_dim = full_dim
        self.min_pallas_elems = min_pallas_elems
        self.permute = make_permute_indices(full_dim, heads, mode, roll, chunks, seed)
        assert np.array_equal(np.sort(self.permute), np.arange(full_dim)), \
            "permute must be a true permutation (no duplicates)"
        self._idx_dev = jnp.asarray(self.permute)

        D = full_dim
        self._path = None

        if D % 128 == 0:
            # Path A: lane-block-aligned permutation -> DMA gather
            for lb in (512, 256, 128):
                src = _block_gather_table(self.permute, lb)
                if src is not None:
                    self._path = "block_gather"
                    self._lane_block = lb
                    self._src_table = jnp.asarray(src)
                    break
            # Path B: pure cyclic shift -> pltpu.roll
            if self._path is None:
                s = int((-int(self.permute[0])) % D)
                if np.array_equal(self.permute, (np.arange(D) - s) % D):
                    self._path = "roll"
                    self._shift = s
            # Path C: arbitrary permutation -> tiled one-hot matmul
            if self._path is None:
                self._path = "matmul"
                self._tn = _pick_lane_tile(D)
                self._tk = self._tn
                P = np.zeros((D, D), np.float32)           # built ONCE at init
                P[self.permute, np.arange(D)] = 1.0
                self._p_np = P
                self._p_cache = {}
                kt, vt, kmax, n_valid = _build_k_table(self.permute, self._tn, self._tk)
                self._ktable = jnp.asarray(kt)
                self._vtable = jnp.asarray(vt)
                self._kmax = kmax
                self._n_valid = n_valid

    def _get_p(self, dtype):
        key = jnp.dtype(dtype).name
        p = self._p_cache.get(key)
        if p is None:
            p = jnp.asarray(self._p_np, dtype=dtype)       # exact: entries are 0/1
            self._p_cache[key] = p
        return p

    def __call__(self, x):
        assert x.ndim == 2 and x.shape[1] == self.full_dim
        B, D = x.shape
        # Gate: tiny or non-128-aligned feature dims -> plain XLA gather.
        if self._path is None or B * D < self.min_pallas_elems:
            return jnp.take(x, self._idx_dev, axis=1)
        if self._path == "block_gather":
            return _block_gather_call(x, self._src_table, self._lane_block)
        if self._path == "roll":
            return _roll_call(x, self._shift)
        # matmul path: MXU is float-only (no int MXU on v7x) -> int dtypes use take
        if not jnp.issubdtype(x.dtype, jnp.floating):
            return jnp.take(x, self._idx_dev, axis=1)
        return _matmul_call(x, self._get_p(x.dtype), self._ktable, self._vtable,
                            self._kmax, self._n_valid, self._tn, self._tk)


# ----------------------------------------------------------------------------
# Self-test
# ----------------------------------------------------------------------------
if __name__ == "__main__":
    key = jax.random.PRNGKey(0)
    B, D, heads = 8, 256, 4
    x = jax.random.normal(key, (B, D), dtype=jnp.float32)

    configs = [
        ("structured",   dict()),                       # matmul path
        ("random",       dict(seed=3)),                 # matmul path
        ("roll",         dict(roll=0.5)),               # 128-aligned -> DMA block-gather
        ("roll",         dict(roll=0.25)),              # unaligned   -> pltpu.roll
        ("chunk_random", dict(heads=2, chunks=1)),      # 128-chunks  -> DMA block-gather
    ]
    for mode, kw in configs:
        h = kw.pop("heads", heads)
        mod = PermuteInPallas(D, h, mode=mode, **kw)
        y = jax.block_until_ready(mod(x))
        y_ref = jnp.take(x, jnp.asarray(mod.permute), axis=1)
        np.testing.assert_allclose(np.asarray(y), np.asarray(y_ref), rtol=0, atol=0)

    # bf16 through the matmul path (P cast is exact: entries are 0/1).
    x_bf16 = x.astype(jnp.bfloat16)
    mod_bf = PermuteInPallas(D, heads, mode="random", seed=7)
    y_bf = jax.block_until_ready(mod_bf(x_bf16))
    y_bf_ref = jnp.take(x_bf16, jnp.asarray(mod_bf.permute), axis=1)
    np.testing.assert_allclose(np.asarray(y_bf.astype(jnp.float32)),
                               np.asarray(y_bf_ref.astype(jnp.float32)), rtol=0, atol=0)

    # Tiny-shape gate (B=2, D=32): falls back to plain XLA gather, semantics identical.
    x_small = jax.random.normal(jax.random.PRNGKey(1), (2, 32), dtype=jnp.float32)
    mod_small = PermuteInPallas(32, 4, mode="structured")
    y_small = jax.block_until_ready(mod_small(x_small))
    y_small_ref = jnp.take(x_small, jnp.asarray(mod_small.permute), axis=1)
    np.testing.assert_allclose(np.asarray(y_small), np.asarray(y_small_ref), rtol=0, atol=0)

    print("KERNEL_OK")
</pallas_src>

<mosaic_0001>
module attributes {stable_mosaic.version = 11 : i64} {
  func.func @kernel(%arg0: i32, %arg1: i32, %arg2: i32, %arg3: memref<1xi32, #tpu.memory_space<smem>>, %arg4: memref<1xi32, #tpu.memory_space<smem>>, %arg5: memref<8x256xf32, #tpu.memory_space<vmem>>, %arg6: memref<256x256xf32, #tpu.memory_space<vmem>>, %arg7: memref<8x256xf32, #tpu.memory_space<vmem>>, %arg8: memref<8x256xf32, #tpu.memory_space<vmem>>) attributes {dimension_semantics = [#tpu.dimension_semantics<parallel>, #tpu.dimension_semantics<parallel>, #tpu.dimension_semantics<arbitrary>], iteration_bounds = array<i64: 1, 1, 1>, scalar_prefetch = 2 : i64, scratch_operands = 1 : i64, tpu.core_type = #tpu.core_type<tc>, window_params = [{transform_indices = @transform_0, window_bounds = array<i64: 8, 256>}, {transform_indices = @transform_1, window_bounds = array<i64: 256, 256>}, {transform_indices = @transform_2, window_bounds = array<i64: 8, 256>}]} {
    %c0_i32 = arith.constant 0 : i32
    %0 = arith.cmpi eq, %arg2, %c0_i32 : i32
    %1 = arith.extui %0 : i1 to i32
    %c0_i32_0 = arith.constant 0 : i32
    %2 = arith.cmpi ne, %1, %c0_i32_0 : i32
    scf.if %2 {
      %cst = arith.constant 0.000000e+00 : f32
      %13 = vector.broadcast %cst : f32 to vector<8x256xf32>
      %c0 = arith.constant 0 : index
      %c0_5 = arith.constant 0 : index
      %14 = vector.load %arg8[%c0, %c0_5] : memref<8x256xf32, #tpu.memory_space<vmem>>, vector<8x256xf32>
      tpu.vector_store %arg8[%c0, %c0_5], %13 {strides = array<i32>} : memref<8x256xf32, #tpu.memory_space<vmem>>, vector<8x256xf32>,
    } else {
    }
    %c1_i32 = arith.constant 1 : i32
    %3 = arith.muli %arg1, %c1_i32 : i32
    %4 = arith.addi %3, %arg2 : i32
    %5 = arith.index_cast %4 : i32 to index
    %6 = memref.load %arg4[%5] : memref<1xi32, #tpu.memory_space<smem>>
    %c1_i32_1 = arith.constant 1 : i32
    %7 = arith.cmpi eq, %6, %c1_i32_1 : i32
    %8 = arith.extui %7 : i1 to i32
    %c0_i32_2 = arith.constant 0 : i32
    %9 = arith.cmpi ne, %8, %c0_i32_2 : i32
    scf.if %9 {
      %c0 = arith.constant 0 : index
      %c0_5 = arith.constant 0 : index
      %13 = vector.load %arg8[%c0, %c0_5] : memref<8x256xf32, #tpu.memory_space<vmem>>, vector<8x256xf32>
      %c0_6 = arith.constant 0 : index
      %c0_7 = arith.constant 0 : index
      %14 = vector.load %arg5[%c0_6, %c0_7] : memref<8x256xf32, #tpu.memory_space<vmem>>, vector<8x256xf32>
      %c0_8 = arith.constant 0 : index
      %c0_9 = arith.constant 0 : index
      %15 = vector.load %arg6[%c0_8, %c0_9] : memref<256x256xf32, #tpu.memory_space<vmem>>, vector<256x256xf32>
      %cst = arith.constant dense<0.000000e+00> : vector<8x256xf32>
      %16 = tpu.matmul %14, %15, %cst {dimension_numbers = #tpu.dot_dimension_numbers<[1], [0], [0], [1], [0, 0, 1, 1], [], []>} : vector<8x256xf32>, vector<256x256xf32>, vector<8x256xf32> -> vector<8x256xf32>
      %17 = arith.addf %13, %16 : vector<8x256xf32>
      %c0_10 = arith.constant 0 : index
      %c0_11 = arith.constant 0 : index
      %18 = vector.load %arg8[%c0_10, %c0_11] : memref<8x256xf32, #tpu.memory_space<vmem>>, vector<8x256xf32>
      tpu.vector_store %arg8[%c0_10, %c0_11], %17 {strides = array<i32>} : memref<8x256xf32, #tpu.memory_space<vmem>>, vector<8x256xf32>,
    } else {
    }
    %c0_i32_3 = arith.constant 0 : i32
    %10 = arith.cmpi eq, %arg2, %c0_i32_3 : i32
    %11 = arith.extui %10 : i1 to i32
    %c0_i32_4 = arith.constant 0 : i32
    %12 = arith.cmpi ne, %11, %c0_i32_4 : i32
    scf.if %12 {
      %c0 = arith.constant 0 : index
      %c0_5 = arith.constant 0 : index
      %13 = vector.load %arg8[%c0, %c0_5] : memref<8x256xf32, #tpu.memory_space<vmem>>, vector<8x256xf32>
      %c0_6 = arith.constant 0 : index
      %c0_7 = arith.constant 0 : index
      %14 = vector.load %arg7[%c0_6, %c0_7] : memref<8x256xf32, #tpu.memory_space<vmem>>, vector<8x256xf32>
      tpu.vector_store %arg7[%c0_6, %c0_7], %13 {strides = array<i32>} : memref<8x256xf32, #tpu.memory_space<vmem>>, vector<8x256xf32>,
    } else {
    }
    return
  }
  func.func @transform_0(%arg0: i32, %arg1: i32, %arg2: i32, %arg3: memref<1xi32, #tpu.memory_space<smem>>, %arg4: memref<1xi32, #tpu.memory_space<smem>>) -> (i32, i32) {
    %c1_i32 = arith.constant 1 : i32
    %0 = arith.muli %arg1, %c1_i32 : i32
    %1 = arith.addi %0, %arg2 : i32
    %2 = arith.index_cast %1 : i32 to index
    %3 = memref.load %arg3[%2] : memref<1xi32, #tpu.memory_space<smem>>
    %c0_i32 = arith.constant 0 : i32
    return %arg0, %3 : i32, i32
  }
  func.func @transform_1(%arg0: i32, %arg1: i32, %arg2: i32, %arg3: memref<1xi32, #tpu.memory_space<smem>>, %arg4: memref<1xi32, #tpu.memory_space<smem>>) -> (i32, i32) {
    %c1_i32 = arith.constant 1 : i32
    %0 = arith.muli %arg1, %c1_i32 : i32
    %1 = arith.addi %0, %arg2 : i32
    %2 = arith.index_cast %1 : i32 to index
    %3 = memref.load %arg3[%2] : memref<1xi32, #tpu.memory_space<smem>>
    %c0_i32 = arith.constant 0 : i32
    return %3, %arg1 : i32, i32
  }
  func.func @transform_2(%arg0: i32, %arg1: i32, %arg2: i32, %arg3: memref<1xi32, #tpu.memory_space<smem>>, %arg4: memref<1xi32, #tpu.memory_space<smem>>) -> (i32, i32) {
    %c0_i32 = arith.constant 0 : i32
    return %arg0, %arg1 : i32, i32
  }
}

</mosaic_0001>

<llo_original>
// kernel: tpu_custom_call.1
$region0: #{tpu_custom_call.1}
  #allocation0 [shape = 'u32[]', space=smem, size = 0x4, offset = 0x4, fixed_abs, tag = 'smem constant byte address 0x4 - core index']
  #allocation1 [shape = 'u32[144,128]{1,0:T(1,128)}', space=vmem, size = 0x12000, scoped, tag = 'internal scratch']
  #allocation2 [shape = 'f32[8,256]{1,0:T(8,128)}', space=vmem, size = 0x2000, scoped, tag = 'scratch operand']
  #allocation3 [shape = 's32[1]{0}', space=sflag, size = 0x4, scoped, tag = 'scoped memory for tpu_custom_call.1']
  #allocation4 [shape = 's32[1]{0:T(128)S(6)}', space=smem, size = 0x200, scoped, tag = 'prefetched SMEM operand 0']
  #allocation5 [shape = 's32[1]{0:T(128)S(6)}', space=smem, size = 0x200, scoped, tag = 'prefetched SMEM operand 1']
  %s0 = inlined_call_operand.<no memory space> [shape: s32[1], index: 0, kind: input, shape index: {}]
  %s1 = inlined_call_operand.<no memory space> [shape: s32[1], index: 1, kind: input, shape index: {}]
  %s2 = inlined_call_operand.hbm [shape: f32[8,256], index: 2, kind: input, shape index: {}]
  %s3 = inlined_call_operand.hbm [shape: f32[256,256], index: 3, kind: input, shape index: {}]
  %s4 = inlined_call_operand.hbm [shape: f32[8,256], index: 4, kind: output, shape index: {}]
  %s5 = sld [smem:[#allocation0]]
  $region38: #{tpu_custom_call.1} parent=0
    _
  %s7 = ssub.s32 1, %s5
  %s8 = scalar_select 0, %s7, %s5
  %9 = sst [smem:[#allocation4]] %s0
  %10 = sst [smem:[#allocation5]] %s1
  $region1: #{tpu_custom_call.1} parent=0
    #allocation6 [shape = 'u8[8192]{0}', space=vmem, size = 0x2000, scoped, tag = 'input window, operand 2, single buffered']
    #allocation7 [shape = 's32[1]{0}', space=sflag, size = 0x4, scoped, tag = 'scoped memory for tpu_custom_call.1']
    #allocation8 [shape = 's32[1]{0}', space=sflag, size = 0x4, scoped, tag = 'scoped memory for tpu_custom_call.1']
    #allocation9 [shape = 'u8[262144]{0}', space=vmem, size = 0x40000, scoped, tag = 'input window, operand 3, single buffered']
    #allocation10 [shape = 's32[1]{0}', space=sflag, size = 0x4, scoped, tag = 'scoped memory for tpu_custom_call.1']
    #allocation11 [shape = 'u8[8192]{0}', space=vmem, size = 0x2000, scoped, tag = 'output window, operand 0, single buffered']
    %11 = vsyncpa [#allocation7], 0
    %12 = vsyncpa [#allocation10], 0
    %13 = vsyncpa [#allocation8], 0
    // Predicated region
    $region2: #{tpu_custom_call.1} parent=1 // pred_check
      _
    $region3: #{tpu_custom_call.1} parent=1 // pred_check_branch
      %15 = sbr.rel (0) target = $region5
    $region4: #{tpu_custom_call.1} parent=1 // pred_region
      %s16 = sadd.s32 0, 0
      %s17 = sld [smem:[#allocation4 + %s16]]
      %s18 = smul.u32 2, %s17
      %s20 = ssub.s32 256, 256
      %21 = vsyncadd [#allocation7], %s20
      %s22 = smul.addr %s18, 128
      %s23 = scalar_lea.hbm %s2, %s22
      %s25 = sshll.u32 [#allocation6], 4
      %s26 = int_to_ptr.vmem [resolvable:$true] %s25
      %28 = dma.hbm_to_vmem [thread:$0]  %s23, 256, %s26, [#allocation7]
    $region5: #{tpu_custom_call.1} parent=1 // pred_fallthru
      _
    // Predicated region
    $region6: #{tpu_custom_call.1} parent=1 // pred_check
      _
    $region7: #{tpu_custom_call.1} parent=1 // pred_check_branch
      %30 = sbr.rel (0) target = $region9
    $region8: #{tpu_custom_call.1} parent=1 // pred_region
      %s31 = sadd.s32 0, 0
      %s32 = sld [smem:[#allocation4 + %s31]]
      %s33 = smul.u32 32, %s32
      %s35 = ssub.s32 8192, 8192
      %36 = vsyncadd [#allocation10], %s35
      %s37 = smul.addr %s33, 2
      %s38 = smul.addr %s37, 128
      %s39 = scalar_lea.hbm %s3, %s38
      %s40 = sshll.u32 [#allocation9], 4
      %s41 = int_to_ptr.vmem [resolvable:$true] %s40
      %46 = dma.hbm_to_vmem [thread:$0]  %s39, 8192, %s41, [#allocation10], 256, 256, 16
    $region9: #{tpu_custom_call.1} parent=1 // pred_fallthru
      _
    // Predicated region
    $region10: #{tpu_custom_call.1} parent=1 // pred_check
      _
    $region11: #{tpu_custom_call.1} parent=1 // pred_check_branch
      %48 = sbr.rel (0) target = $region13
    $region12: #{tpu_custom_call.1} parent=1 // pred_region
      %49 = dma.done [#allocation7], 256
    $region13: #{tpu_custom_call.1} parent=1 // pred_fallthru
      _
    // Predicated region
    $region14: #{tpu_custom_call.1} parent=1 // pred_check
      _
    $region15: #{tpu_custom_call.1} parent=1 // pred_check_branch
      %51 = sbr.rel (0) target = $region17
    $region16: #{tpu_custom_call.1} parent=1 // pred_region
      %52 = dma.done [#allocation10], 8192
    $region17: #{tpu_custom_call.1} parent=1 // pred_fallthru
      _
    %s53 = sadd.s32 0, 0
    %s54 = sld [smem:[#allocation4 + %s53]]
    %s55 = smul.u32 2, %s54
    %s56 = sadd.s32 0, 0
    %s57 = sld [smem:[#allocation4 + %s56]]
    %s58 = smul.u32 32, %s57
    %p59 = scmp.eq.s32.totalorder 0, 0
    // Predicated region
    $region18: #{tpu_custom_call.1} parent=1 // pred_check
      %p60 = pneg %p59
    $region19: #{tpu_custom_call.1} parent=1 // pred_check_branch
      %62 = sbr.rel (%p60) target = $region21
    $region20: #{tpu_custom_call.1} parent=1 // pred_region
      %63 = vst [vmem:[#allocation2] sm:$0xff] 0.0
      %64 = vst [vmem:[#allocation2 + $0x8] sm:$0xff] 0.0
    $region21: #{tpu_custom_call.1} parent=1 // pred_fallthru
      _
    %s65 = sadd.s32 0, 0
    %s66 = sld [smem:[#allocation5 + %s65]]
    %p67 = scmp.eq.s32.totalorder %s66, 1
    // Predicated region
    $region22: #{tpu_custom_call.1} parent=1 // pred_check
      %p68 = pneg %p67
    $region23: #{tpu_custom_call.1} parent=1 // pred_check_branch
      %70 = sbr.rel (%p68) target = $region25
    $region24: #{tpu_custom_call.1} parent=1 // pred_region
      %v71 = vld [vmem:[#allocation2] sm:$0xff]
      %v72 = vld [vmem:[#allocation2 + $0x8] sm:$0xff]
      %v73 = vld [vmem:[#allocation6] sm:$0xff]
      %v74 = vld [vmem:[#allocation6 + $0x8] sm:$0xff]
      %v75 = vld [vmem:[#allocation9] sm:$0xff]
      %v76 = vld [vmem:[#allocation9 + $0x8] sm:$0xff]
      %v77 = vld [vmem:[#allocation9 + $0x10] sm:$0xff]
      %v78 = vld [vmem:[#allocation9 + $0x18] sm:$0xff]
      %v79 = vld [vmem:[#allocation9 + $0x20] sm:$0xff]
      %v80 = vld [vmem:[#allocation9 + $0x28] sm:$0xff]
      %v81 = vld [vmem:[#allocation9 + $0x30] sm:$0xff]
      %v82 = vld [vmem:[#allocation9 + $0x38] sm:$0xff]
      %v83 = vld [vmem:[#allocation9 + $0x40] sm:$0xff]
      %v84 = vld [vmem:[#allocation9 + $0x48] sm:$0xff]
      %v85 = vld [vmem:[#allocation9 + $0x50] sm:$0xff]
      %v86 = vld [vmem:[#allocation9 + $0x58] sm:$0xff]
      %v87 = vld [vmem:[#allocation9 + $0x60] sm:$0xff]
      %v88 = vld [vmem:[#allocation9 + $0x68] sm:$0xff]
      %v89 = vld [vmem:[#allocation9 + $0x70] sm:$0xff]
      %v90 = vld [vmem:[#allocation9 + $0x78] sm:$0xff]
      %v91 = vld [vmem:[#allocation9 + $0x80] sm:$0xff]
      %v92 = vld [vmem:[#allocation9 + $0x88] sm:$0xff]
      %v93 = vld [vmem:[#allocation9 + $0x90] sm:$0xff]
      %v94 = vld [vmem:[#allocation9 + $0x98] sm:$0xff]
      %v95 = vld [vmem:[#allocation9 + $0xa0] sm:$0xff]
      %v96 = vld [vmem:[#allocation9 + $0xa8] sm:$0xff]
      %v97 = vld [vmem:[#allocation9 + $0xb0] sm:$0xff]
      %v98 = vld [vmem:[#allocation9 + $0xb8] sm:$0xff]
      %v99 = vld [vmem:[#allocation9 + $0xc0] sm:$0xff]
      %v100 = vld [vmem:[#allocation9 + $0xc8] sm:$0xff]
      %v101 = vld [vmem:[#allocation9 + $0xd0] sm:$0xff]
      %v102 = vld [vmem:[#allocation9 + $0xd8] sm:$0xff]
      %v103 = vld [vmem:[#allocation9 + $0xe0] sm:$0xff]
      %v104 = vld [vmem:[#allocation9 + $0xe8] sm:$0xff]
      %v105 = vld [vmem:[#allocation9 + $0xf0] sm:$0xff]
      %v106 = vld [vmem:[#allocation9 + $0xf8] sm:$0xff]
      %v107 = vld [vmem:[#allocation9 + $0x100] sm:$0xff]
      %v108 = vld [vmem:[#allocation9 + $0x108] sm:$0xff]
      %v109 = vld [vmem:[#allocation9 + $0x110] sm:$0xff]
      %v110 = vld [vmem:[#allocation9 + $0x118] sm:$0xff]
      %v111 = vld [vmem:[#allocation9 + $0x120] sm:$0xff]
      %v112 = vld [vmem:[#allocation9 + $0x128] sm:$0xff]
      %v113 = vld [vmem:[#allocation9 + $0x130] sm:$0xff]
      %v114 = vld [vmem:[#allocation9 + $0x138] sm:$0xff]
      %v115 = vld [vmem:[#allocation9 + $0x140] sm:$0xff]
      %v116 = vld [vmem:[#allocation9 + $0x148] sm:$0xff]
      %v117 = vld [vmem:[#allocation9 + $0x150] sm:$0xff]
      %v118 = vld [vmem:[#allocation9 + $0x158] sm:$0xff]
      %v119 = vld [vmem:[#allocation9 + $0x160] sm:$0xff]
      %v120 = vld [vmem:[#allocation9 + $0x168] sm:$0xff]
      %v121 = vld [vmem:[#allocation9 + $0x170] sm:$0xff]
      %v122 = vld [vmem:[#allocation9 + $0x178] sm:$0xff]
      %v123 = vld [vmem:[#allocation9 + $0x180] sm:$0xff]
      %v124 = vld [vmem:[#allocation9 + $0x188] sm:$0xff]
      %v125 = vld [vmem:[#allocation9 + $0x190] sm:$0xff]
      %v126 = vld [vmem:[#allocation9 + $0x198] sm:$0xff]
      %v127 = vld [vmem:[#allocation9 + $0x1a0] sm:$0xff]
      %v128 = vld [vmem:[#allocation9 + $0x1a8] sm:$0xff]
      %v129 = vld [vmem:[#allocation9 + $0x1b0] sm:$0xff]
      %v130 = vld [vmem:[#allocation9 + $0x1b8] sm:$0xff]
      %v131 = vld [vmem:[#allocation9 + $0x1c0] sm:$0xff]
      %v132 = vld [vmem:[#allocation9 + $0x1c8] sm:$0xff]
      %v133 = vld [vmem:[#allocation9 + $0x1d0] sm:$0xff]
      %v134 = vld [vmem:[#allocation9 + $0x1d8] sm:$0xff]
      %v135 = vld [vmem:[#allocation9 + $0x1e0] sm:$0xff]
      %v136 = vld [vmem:[#allocation9 + $0x1e8] sm:$0xff]
      %v137 = vld [vmem:[#allocation9 + $0x1f0] sm:$0xff]
      %v138 = vld [vmem:[#allocation9 + $0x1f8] sm:$0xff]
      %139 = vmatprep.subr.mxu0 %v76
      %140 = vmatpush1.msra.mxu0 %v75
      %141 = vmatprep.subr.mxu0 %v78
      %142 = vmatpush1.msra.mxu0 %v77
      %143 = vmatprep.subr.mxu0 %v80
      %144 = vmatpush1.msra.mxu0 %v79
      %145 = vmatprep.subr.mxu0 %v82
      %146 = vmatpush1.msra.mxu0 %v81
      %147 = vmatprep.subr.mxu0 %v84
      %148 = vmatpush1.msra.mxu0 %v83
      %149 = vmatprep.subr.mxu0 %v86
      %150 = vmatpush1.msra.mxu0 %v85
      %151 = vmatprep.subr.mxu0 %v88
      %152 = vmatpush1.msra.mxu0 %v87
      %153 = vmatprep.subr.mxu0 %v90
      %154 = vmatpush1.msra.mxu0 %v89
      %155 = vmatprep.subr.mxu0 %v92
      %156 = vmatpush1.msra.mxu0 %v91
      %157 = vmatprep.subr.mxu0 %v94
      %158 = vmatpush1.msra.mxu0 %v93
      %159 = vmatprep.subr.mxu0 %v96
      %160 = vmatpush1.msra.mxu0 %v95
      %161 = vmatprep.subr.mxu0 %v98
      %162 = vmatpush1.msra.mxu0 %v97
      %163 = vmatprep.subr.mxu0 %v100
      %164 = vmatpush1.msra.mxu0 %v99
      %165 = vmatprep.subr.mxu0 %v102
      %166 = vmatpush1.msra.mxu0 %v101
      %167 = vmatprep.subr.mxu0 %v104
      %168 = vmatpush1.msra.mxu0 %v103
      %169 = vmatprep.subr.mxu0 %v106
      %170 = vmatpush1.msra.mxu0 %v105
      %171 = vmatprep.subr.mxu0 %v108
      %172 = vmatpush1.msra.mxu0 %v107
      %173 = vmatprep.subr.mxu0 %v110
      %174 = vmatpush1.msra.mxu0 %v109
      %175 = vmatprep.subr.mxu0 %v112
      %176 = vmatpush1.msra.mxu0 %v111
      %177 = vmatprep.subr.mxu0 %v114
      %178 = vmatpush1.msra.mxu0 %v113
      %179 = vmatprep.subr.mxu0 %v116
      %180 = vmatpush1.msra.mxu0 %v115
      %181 = vmatprep.subr.mxu0 %v118
      %182 = vmatpush1.msra.mxu0 %v117
      %183 = vmatprep.subr.mxu0 %v120
      %184 = vmatpush1.msra.mxu0 %v119
      %185 = vmatprep.subr.mxu0 %v122
      %186 = vmatpush1.msra.mxu0 %v121
      %187 = vmatprep.subr.mxu0 %v124
      %188 = vmatpush1.msra.mxu0 %v123
      %189 = vmatprep.subr.mxu0 %v126
      %190 = vmatpush1.msra.mxu0 %v125
      %191 = vmatprep.subr.mxu0 %v128
      %192 = vmatpush1.msra.mxu0 %v127
      %193 = vmatprep.subr.mxu0 %v130
      %194 = vmatpush1.msra.mxu0 %v129
      %195 = vmatprep.subr.mxu0 %v132
      %196 = vmatpush1.msra.mxu0 %v131
      %197 = vmatprep.subr.mxu0 %v134
      %198 = vmatpush1.msra.mxu0 %v133
      %199 = vmatprep.subr.mxu0 %v136
      %200 = vmatpush1.msra.mxu0 %v135
      %201 = vmatprep.subr.mxu0 %v138
      %202 = vmatpush1.msra.mxu0 %v137
      %203 = vmatprep.mubr.f32.mxu0 %v74
      %204 = vmatmul.mubr.f32.gmra.mrb[0].mxu0 %v73
      %v205 = vpop.f32.mrb[0].mxu0
      %v206 = vadd.f32 0.0, %v205
      %v207 = vpop.f32.mrb[0].mxu0
      %v208 = vadd.f32 0.0, %v207
      %209 = vdwg.mxu0
      %v210 = vadd.f32 %v71, %v206
      %v211 = vadd.f32 %v72, %v208
      %212 = vst [vmem:[#allocation2] sm:$0xff] %v210
      %213 = vst [vmem:[#allocation2 + $0x8] sm:$0xff] %v211
    $region25: #{tpu_custom_call.1} parent=1 // pred_fallthru
      _
    // Predicated region
    $region26: #{tpu_custom_call.1} parent=1 // pred_check
      %p214 = pneg %p59
    $region27: #{tpu_custom_call.1} parent=1 // pred_check_branch
      %216 = sbr.rel (%p214) target = $region29
    $region28: #{tpu_custom_call.1} parent=1 // pred_region
      %v217 = vld [vmem:[#allocation2] sm:$0xff]
      %v218 = vld [vmem:[#allocation2 + $0x8] sm:$0xff]
      %219 = vst [vmem:[#allocation11] sm:$0xff] %v217
      %220 = vst [vmem:[#allocation11 + $0x8] sm:$0xff] %v218
    $region29: #{tpu_custom_call.1} parent=1 // pred_fallthru
      _
    // Predicated region
    $region30: #{tpu_custom_call.1} parent=1 // pred_check
      _
    $region31: #{tpu_custom_call.1} parent=1 // pred_check_branch
      %222 = sbr.rel (0) target = $region33
    $region32: #{tpu_custom_call.1} parent=1 // pred_region
      %s224 = ssub.s32 256, 256
      %225 = vsyncadd [#allocation8], %s224
      %s227 = sshll.u32 [#allocation11], 4
      %s228 = int_to_ptr.vmem [resolvable:$true] %s227
      %230 = dma.vmem_to_hbm [thread:$0]  %s228, 256, %s4, [#allocation8]
    $region33: #{tpu_custom_call.1} parent=1 // pred_fallthru
      _
    // Predicated region
    $region34: #{tpu_custom_call.1} parent=1 // pred_check
      _
    $region35: #{tpu_custom_call.1} parent=1 // pred_check_branch
      %232 = sbr.rel (0) target = $region37
    $region36: #{tpu_custom_call.1} parent=1 // pred_region
      %233 = dma.done [#allocation8], 256
    $region37: #{tpu_custom_call.1} parent=1 // pred_fallthru
      _
    %234 = vsyncpa [#allocation7], 1
    %235 = vsyncpa [#allocation10], 1
    %236 = vsyncpa [#allocation8], 1

</llo_original>
